<compile_context>
chip_gen: v5e
topology: v5e:2x2
jax: 0.10.0
libtpu: 0.0.40
codegen_flags: <defaults>
</compile_context>

<pallas_src>
import math
import jax
import jax.numpy as jnp
from jax.experimental import pallas as pl
from jax.experimental.pallas import tpu as pltpu


def raim_kernel(feat_ref, xa_ref, xj_ref, conf_ref, cnm_ref,
                pred0_ref, predr_ref, pred1t_ref,
                wa1_ref, ba1_ref, wa2_ref, ba2_ref,
                w1a_ref, w1b_ref, b1_ref, w2_ref, b2_ref,
                wih_ref, whh_ref, bih_ref, bhh_ref,
                out_ref):
    f32 = jnp.float32
    feat = feat_ref[...]                      # (N, F)
    N, F = feat.shape

    # --- fc_alpha: fused layer-1 (single K=2D matmul) + layer-2 --------------
    h_a = jnp.maximum(
        jnp.dot(xa_ref[...], wa1_ref[...], preferred_element_type=f32)
        + ba1_ref[...], 0.0)                                           # (NN, D)
    alpha = jnp.dot(h_a, wa2_ref[...],
                    preferred_element_type=f32) + ba2_ref[...]         # (NN, F)

    # --- attention over predicate-name embeddings (pred1 pre-transposed) -----
    logits = jnp.dot(alpha, pred1t_ref[...],
                     preferred_element_type=f32) * (1.0 / math.sqrt(F))  # (NN, P)
    logits = logits - jnp.max(logits, axis=-1, keepdims=True)
    ex = jnp.exp(logits)
    attn = ex * pl.reciprocal(jnp.sum(ex, axis=-1, keepdims=True), approx=True)

    # attn_pred = [1-conf | conf*attn] @ PredNameEmb (split to avoid lane concat)
    conf = conf_ref[...]                                               # (NN, 1)
    attn_pred = (1.0 - conf) * pred0_ref[...] + jnp.dot(
        conf * attn, predr_ref[...], preferred_element_type=f32)       # (NN, F)

    # --- fused fc_s | fc_o (identical inputs -> one wide 2-layer MLP) --------
    # memory_ij[i,j] = conf_norm[i,j] * fc_s([feat[j], attn_pred[i,j]]) * mask
    # memory_ji re-indexed with (p,q)=(j,i) shares the same per-pair input, so
    # one MLP with hstacked layer-1 weights and block-diag layer-2 covers both.
    hid = jnp.maximum(
        jnp.dot(xj_ref[...], w1a_ref[...], preferred_element_type=f32)
        + jnp.dot(attn_pred, w1b_ref[...], preferred_element_type=f32)
        + b1_ref[...], 0.0)                                            # (NN, 2D)
    memc = cnm_ref[...] * (
        jnp.dot(hid, w2_ref[...], preferred_element_type=f32)
        + b2_ref[...])                                                 # (NN, 2F)

    # --- reductions: reshape + axis sums (no one-hot selector matmuls) -------
    memc3 = memc.reshape(N, N, 2 * F)
    red_j = jnp.sum(memc3, axis=1)   # (N, 2F): [:, :F] = sum_j mem_s[i, j, :]
    red_i = jnp.sum(memc3, axis=0)   # (N, 2F): [:, F:] = sum_i mem_o[i, j, :]
    memory = red_j[:, :F] + red_i[:, F:]                               # (N, F)

    # --- fused single-step GRU (gate order r, z, n; b_hn lives inside r*(.)) -
    gi = jnp.dot(feat, wih_ref[...], preferred_element_type=f32) + bih_ref[...]
    gh = jnp.dot(memory, whh_ref[...], preferred_element_type=f32) + bhh_ref[...]
    r = jax.nn.sigmoid(gi[:, :F] + gh[:, :F])
    z = jax.nn.sigmoid(gi[:, F:2 * F] + gh[:, F:2 * F])
    n = jnp.tanh(gi[:, 2 * F:] + r * gh[:, 2 * F:])
    out_ref[...] = (1.0 - z) * n + z * memory


def raim_pallas(feature_node, pred_emb, pred_emb1, conf_scores, p):
    """feature_node (N, D); pred_emb (P+1, D); pred_emb1 (P, D); conf (N, N)."""
    N, D = feature_node.shape
    F = p["wa2"].shape[1]
    NN = N * N
    f32 = jnp.float32

    # ---- data plumbing in plain XLA (free in HBM) ---------------------------
    x_i = jnp.repeat(feature_node, N, axis=0)            # (NN, D): feat[k // N]
    x_j = jnp.tile(feature_node, (N, 1))                 # (NN, D): feat[k %  N]
    xa = jnp.concatenate([x_i, x_j], axis=-1)            # (NN, 2D)

    conf_flat = conf_scores.reshape(NN, 1)
    nrm = jnp.sqrt(jnp.sum(conf_scores * conf_scores, axis=1, keepdims=True))
    conf_norm = conf_scores / jnp.maximum(nrm, 1e-12)    # F.normalize(conf, dim=1)
    cn_mask = (conf_norm * (1.0 - jnp.eye(N, dtype=f32))).reshape(NN, 1)

    # fused fc_s | fc_o weights (shared input -> single wide hidden layer)
    w1a_so = jnp.concatenate([p["ws1"][:D], p["wo1"][:D]], axis=1)   # (D, 2D)
    w1b_so = jnp.concatenate([p["ws1"][D:], p["wo1"][D:]], axis=1)   # (D, 2D)
    b1_so = jnp.concatenate([p["bs1"], p["bo1"]])[None, :]           # (1, 2D)
    w2_so = jnp.zeros((2 * D, 2 * F), f32)
    w2_so = w2_so.at[:D, :F].set(p["ws2"]).at[D:, F:].set(p["wo2"])  # block-diag
    b2_so = jnp.concatenate([p["bs2"], p["bo2"]])[None, :]           # (1, 2F)

    # fused GRU gate weights: two (F, 3F) matmuls instead of six (F, F) ones
    wih_all = jnp.concatenate([p["wih"][0], p["wih"][1], p["wih"][2]], axis=1)
    whh_all = jnp.concatenate([p["whh"][0], p["whh"][1], p["whh"][2]], axis=1)
    bih_all = p["bih"].reshape(1, 3 * F)
    bhh_all = p["bhh"].reshape(1, 3 * F)

    args = [
        feature_node, xa, x_j, conf_flat, cn_mask,
        pred_emb[:1], pred_emb[1:], pred_emb1.T,
        p["wa1"], p["ba1"][None, :], p["wa2"], p["ba2"][None, :],
        w1a_so, w1b_so, b1_so, w2_so, b2_so,
        wih_all, whh_all, bih_all, bhh_all,
    ]
    vmem = lambda: pl.BlockSpec(memory_space=pltpu.MemorySpace.VMEM)
    return pl.pallas_call(
        raim_kernel,
        out_shape=jax.ShapeDtypeStruct((N, F), jnp.float32),
        in_specs=[vmem() for _ in args],
        out_specs=vmem(),
    )(*args)


def raim_reference(feature_node, pred_emb, pred_emb1, conf_scores, p):
    """Direct (un-optimized) JAX transcription of the PyTorch forward."""
    N, D = feature_node.shape
    F = p["wa2"].shape[1]

    def mlp(x, w1, b1, w2, b2):
        return jax.nn.relu(x @ w1 + b1) @ w2 + b2

    x_r = jnp.repeat(feature_node[:, None, :], N, axis=1)
    x_c = jnp.repeat(feature_node[None, :, :], N, axis=0)
    con = jnp.concatenate([x_r, x_c], axis=-1)                      # (N,N,2D)
    conf = conf_scores[:, :, None]                                  # (N,N,1)
    attn_w = mlp(con, p["wa1"], p["ba1"], p["wa2"], p["ba2"]) @ pred_emb1.T
    attn = jax.nn.softmax(attn_w / math.sqrt(F), axis=-1)
    attn_all = jnp.concatenate([1.0 - conf, conf * attn], axis=-1)
    attn_pred = attn_all @ pred_emb                                 # (N,N,D)
    nrm = jnp.sqrt(jnp.sum(conf * conf, axis=1, keepdims=True))
    conf_norm = conf / jnp.maximum(nrm, 1e-12)
    feat1 = jnp.repeat(feature_node[None, :, :], N, axis=0)
    mask = (1.0 - jnp.eye(N))[:, :, None]
    mem_ij = conf_norm * mlp(jnp.concatenate([feat1, attn_pred], -1),
                             p["ws1"], p["bs1"], p["ws2"], p["bs2"]) * mask
    mem_ji = (jnp.transpose(conf_norm, (1, 0, 2))
              * mlp(jnp.concatenate([jnp.transpose(feat1, (1, 0, 2)),
                                     jnp.transpose(attn_pred, (1, 0, 2))], -1),
                    p["wo1"], p["bo1"], p["wo2"], p["bo2"])
              * jnp.transpose(mask, (1, 0, 2)))
    memory = jnp.sum(mem_ij + mem_ji, axis=1)                       # (N,F)

    x, h = feature_node, memory
    wih, whh, bih, bhh = p["wih"], p["whh"], p["bih"], p["bhh"]
    r = jax.nn.sigmoid(x @ wih[0] + bih[0] + h @ whh[0] + bhh[0])
    z = jax.nn.sigmoid(x @ wih[1] + bih[1] + h @ whh[1] + bhh[1])
    n = jnp.tanh(x @ wih[2] + bih[2] + r * (h @ whh[2] + bhh[2]))
    return (1.0 - z) * n + z * h


def init_params(key, enti_dim, ffn_dim):
    D, F = enti_dim, ffn_dim
    ks = iter(jax.random.split(key, 16))
    w = lambda s: 0.1 * jax.random.normal(next(ks), s, jnp.float32)
    # PyTorch Linear weights are (out, in); stored here pre-transposed (in, out).
    # NOTE: the torch __init__ deepcopies fc_alpha into fc_s/fc_o (identical
    # initial weights); we draw distinct values so every branch is exercised.
    p = {}
    for name in ("a", "s", "o"):
        p[f"w{name}1"] = w((2 * D, D))     # MLP layer 1: 2*enti_dim -> enti_dim
        p[f"b{name}1"] = w((D,))
        p[f"w{name}2"] = w((D, F))         # MLP layer 2: enti_dim -> ffn_dim
        p[f"b{name}2"] = w((F,))
    p["wih"] = w((3, F, F))                # GRU W_ih, gate order [r, z, n]
    p["whh"] = w((3, F, F))
    p["bih"] = w((3, F))
    p["bhh"] = w((3, F))
    return p


if __name__ == "__main__":
    key = jax.random.PRNGKey(0)
    N, D, P = 8, 32, 8                      # num_node, enti_dim == ffn_dim, #predicates
    k_feat, k_pe, k_pe1, k_conf, k_par = jax.random.split(key, 5)
    feature_node = jax.random.normal(k_feat, (N, D), jnp.float32)   # (1,N,D) w/ seq squeezed
    PredNameEmb = jax.random.normal(k_pe, (P + 1, D), jnp.float32)
    PredNameEmb_1 = jax.random.normal(k_pe1, (P, D), jnp.float32)
    conf_scores = jax.random.uniform(k_conf, (N, N), jnp.float32)
    params = init_params(k_par, D, D)

    raim = jax.jit(raim_pallas)
    out = raim(feature_node, PredNameEmb, PredNameEmb_1, conf_scores, params)
    jax.block_until_ready(out)

    ref = raim_reference(feature_node, PredNameEmb, PredNameEmb_1, conf_scores, params)
    assert out.shape == (N, D)
    max_err = float(jnp.max(jnp.abs(out - ref)))
    if not jnp.allclose(out, ref, rtol=1e-3, atol=1e-3):
        raise SystemExit(f"mismatch vs reference, max_err={max_err}")
    print("KERNEL_OK")
</pallas_src>

<mosaic_0001>
module attributes {stable_mosaic.version = 11 : i64} {
  func.func @raim_kernel(%arg0: memref<8x32xf32, #tpu.memory_space<vmem>>, %arg1: memref<64x64xf32, #tpu.memory_space<vmem>>, %arg2: memref<64x32xf32, #tpu.memory_space<vmem>>, %arg3: memref<64x1xf32, #tpu.memory_space<vmem>>, %arg4: memref<64x1xf32, #tpu.memory_space<vmem>>, %arg5: memref<1x32xf32, #tpu.memory_space<vmem>>, %arg6: memref<8x32xf32, #tpu.memory_space<vmem>>, %arg7: memref<32x8xf32, #tpu.memory_space<vmem>>, %arg8: memref<64x32xf32, #tpu.memory_space<vmem>>, %arg9: memref<1x32xf32, #tpu.memory_space<vmem>>, %arg10: memref<32x32xf32, #tpu.memory_space<vmem>>, %arg11: memref<1x32xf32, #tpu.memory_space<vmem>>, %arg12: memref<32x64xf32, #tpu.memory_space<vmem>>, %arg13: memref<32x64xf32, #tpu.memory_space<vmem>>, %arg14: memref<1x64xf32, #tpu.memory_space<vmem>>, %arg15: memref<64x64xf32, #tpu.memory_space<vmem>>, %arg16: memref<1x64xf32, #tpu.memory_space<vmem>>, %arg17: memref<32x96xf32, #tpu.memory_space<vmem>>, %arg18: memref<32x96xf32, #tpu.memory_space<vmem>>, %arg19: memref<1x96xf32, #tpu.memory_space<vmem>>, %arg20: memref<1x96xf32, #tpu.memory_space<vmem>>, %arg21: memref<8x32xf32, #tpu.memory_space<vmem>>) attributes {dimension_semantics = [], scalar_prefetch = 0 : i64, scratch_operands = 0 : i64, tpu.core_type = #tpu.core_type<tc>} {
    %c0 = arith.constant 0 : index
    %c0_0 = arith.constant 0 : index
    %0 = vector.load %arg0[%c0, %c0_0] : memref<8x32xf32, #tpu.memory_space<vmem>>, vector<8x32xf32>
    %c0_1 = arith.constant 0 : index
    %c0_2 = arith.constant 0 : index
    %1 = vector.load %arg1[%c0_1, %c0_2] : memref<64x64xf32, #tpu.memory_space<vmem>>, vector<64x64xf32>
    %c0_3 = arith.constant 0 : index
    %c0_4 = arith.constant 0 : index
    %2 = vector.load %arg8[%c0_3, %c0_4] : memref<64x32xf32, #tpu.memory_space<vmem>>, vector<64x32xf32>
    %cst = arith.constant dense<0.000000e+00> : vector<64x32xf32>
    %3 = tpu.matmul %1, %2, %cst {dimension_numbers = #tpu.dot_dimension_numbers<[1], [0], [0], [1], [0, 0, 1, 1], [], []>} : vector<64x64xf32>, vector<64x32xf32>, vector<64x32xf32> -> vector<64x32xf32>
    %c0_5 = arith.constant 0 : index
    %c0_6 = arith.constant 0 : index
    %4 = vector.load %arg9[%c0_5, %c0_6] : memref<1x32xf32, #tpu.memory_space<vmem>>, vector<1x32xf32>
    %5 = vector.broadcast %4 : vector<1x32xf32> to vector<64x32xf32>
    %6 = arith.addf %3, %5 : vector<64x32xf32>
    %cst_7 = arith.constant 0.000000e+00 : f32
    %7 = vector.broadcast %cst_7 : f32 to vector<64x32xf32>
    %8 = arith.maximumf %6, %7 : vector<64x32xf32>
    %c0_8 = arith.constant 0 : index
    %c0_9 = arith.constant 0 : index
    %9 = vector.load %arg10[%c0_8, %c0_9] : memref<32x32xf32, #tpu.memory_space<vmem>>, vector<32x32xf32>
    %cst_10 = arith.constant dense<0.000000e+00> : vector<64x32xf32>
    %10 = tpu.matmul %8, %9, %cst_10 {dimension_numbers = #tpu.dot_dimension_numbers<[1], [0], [0], [1], [0, 0, 1, 1], [], []>} : vector<64x32xf32>, vector<32x32xf32>, vector<64x32xf32> -> vector<64x32xf32>
    %c0_11 = arith.constant 0 : index
    %c0_12 = arith.constant 0 : index
    %11 = vector.load %arg11[%c0_11, %c0_12] : memref<1x32xf32, #tpu.memory_space<vmem>>, vector<1x32xf32>
    %12 = vector.broadcast %11 : vector<1x32xf32> to vector<64x32xf32>
    %13 = arith.addf %10, %12 : vector<64x32xf32>
    %c0_13 = arith.constant 0 : index
    %c0_14 = arith.constant 0 : index
    %14 = vector.load %arg7[%c0_13, %c0_14] : memref<32x8xf32, #tpu.memory_space<vmem>>, vector<32x8xf32>
    %cst_15 = arith.constant dense<0.000000e+00> : vector<64x8xf32>
    %15 = tpu.matmul %13, %14, %cst_15 {dimension_numbers = #tpu.dot_dimension_numbers<[1], [0], [0], [1], [0, 0, 1, 1], [], []>} : vector<64x32xf32>, vector<32x8xf32>, vector<64x8xf32> -> vector<64x8xf32>
    %cst_16 = arith.constant 0.176776692 : f32
    %16 = vector.broadcast %cst_16 : f32 to vector<64x8xf32>
    %17 = arith.mulf %15, %16 : vector<64x8xf32>
    %cst_17 = arith.constant dense<0xFF800000> : vector<64xf32>
    %18 = vector.multi_reduction <maximumf>, %17, %cst_17 [1] : vector<64x8xf32> to vector<64xf32>
    %19 = vector.shape_cast %18 : vector<64xf32> to vector<64x1xf32>
    %20 = vector.broadcast %19 : vector<64x1xf32> to vector<64x8xf32>
    %21 = arith.subf %17, %20 : vector<64x8xf32>
    %22 = math.exp %21 : vector<64x8xf32>
    %cst_18 = arith.constant dense<0.000000e+00> : vector<64xf32>
    %23 = vector.multi_reduction <add>, %22, %cst_18 [1] : vector<64x8xf32> to vector<64xf32>
    %24 = vector.shape_cast %23 : vector<64xf32> to vector<64x1xf32>
    %25 = tpu.reciprocal %24 {approx = true} : vector<64x1xf32> -> vector<64x1xf32>
    %26 = vector.broadcast %25 : vector<64x1xf32> to vector<64x8xf32>
    %27 = arith.mulf %22, %26 : vector<64x8xf32>
    %c0_19 = arith.constant 0 : index
    %c0_20 = arith.constant 0 : index
    %28 = vector.load %arg3[%c0_19, %c0_20] : memref<64x1xf32, #tpu.memory_space<vmem>>, vector<64x1xf32>
    %cst_21 = arith.constant 1.000000e+00 : f32
    %29 = vector.broadcast %cst_21 : f32 to vector<64x1xf32>
    %30 = arith.subf %29, %28 : vector<64x1xf32>
    %c0_22 = arith.constant 0 : index
    %c0_23 = arith.constant 0 : index
    %31 = vector.load %arg5[%c0_22, %c0_23] : memref<1x32xf32, #tpu.memory_space<vmem>>, vector<1x32xf32>
    %32 = vector.broadcast %30 : vector<64x1xf32> to vector<64x32xf32>
    %33 = vector.broadcast %31 : vector<1x32xf32> to vector<64x32xf32>
    %34 = arith.mulf %32, %33 : vector<64x32xf32>
    %35 = vector.broadcast %28 : vector<64x1xf32> to vector<64x8xf32>
    %36 = arith.mulf %35, %27 : vector<64x8xf32>
    %c0_24 = arith.constant 0 : index
    %c0_25 = arith.constant 0 : index
    %37 = vector.load %arg6[%c0_24, %c0_25] : memref<8x32xf32, #tpu.memory_space<vmem>>, vector<8x32xf32>
    %cst_26 = arith.constant dense<0.000000e+00> : vector<64x32xf32>
    %38 = tpu.matmul %36, %37, %cst_26 {dimension_numbers = #tpu.dot_dimension_numbers<[1], [0], [0], [1], [0, 0, 1, 1], [], []>} : vector<64x8xf32>, vector<8x32xf32>, vector<64x32xf32> -> vector<64x32xf32>
    %39 = arith.addf %34, %38 : vector<64x32xf32>
    %c0_27 = arith.constant 0 : index
    %c0_28 = arith.constant 0 : index
    %40 = vector.load %arg2[%c0_27, %c0_28] : memref<64x32xf32, #tpu.memory_space<vmem>>, vector<64x32xf32>
    %c0_29 = arith.constant 0 : index
    %c0_30 = arith.constant 0 : index
    %41 = vector.load %arg12[%c0_29, %c0_30] : memref<32x64xf32, #tpu.memory_space<vmem>>, vector<32x64xf32>
    %cst_31 = arith.constant dense<0.000000e+00> : vector<64x64xf32>
    %42 = tpu.matmul %40, %41, %cst_31 {dimension_numbers = #tpu.dot_dimension_numbers<[1], [0], [0], [1], [0, 0, 1, 1], [], []>} : vector<64x32xf32>, vector<32x64xf32>, vector<64x64xf32> -> vector<64x64xf32>
    %c0_32 = arith.constant 0 : index
    %c0_33 = arith.constant 0 : index
    %43 = vector.load %arg13[%c0_32, %c0_33] : memref<32x64xf32, #tpu.memory_space<vmem>>, vector<32x64xf32>
    %cst_34 = arith.constant dense<0.000000e+00> : vector<64x64xf32>
    %44 = tpu.matmul %39, %43, %cst_34 {dimension_numbers = #tpu.dot_dimension_numbers<[1], [0], [0], [1], [0, 0, 1, 1], [], []>} : vector<64x32xf32>, vector<32x64xf32>, vector<64x64xf32> -> vector<64x64xf32>
    %45 = arith.addf %42, %44 : vector<64x64xf32>
    %c0_35 = arith.constant 0 : index
    %c0_36 = arith.constant 0 : index
    %46 = vector.load %arg14[%c0_35, %c0_36] : memref<1x64xf32, #tpu.memory_space<vmem>>, vector<1x64xf32>
    %47 = vector.broadcast %46 : vector<1x64xf32> to vector<64x64xf32>
    %48 = arith.addf %45, %47 : vector<64x64xf32>
    %cst_37 = arith.constant 0.000000e+00 : f32
    %49 = vector.broadcast %cst_37 : f32 to vector<64x64xf32>
    %50 = arith.maximumf %48, %49 : vector<64x64xf32>
    %c0_38 = arith.constant 0 : index
    %c0_39 = arith.constant 0 : index
    %51 = vector.load %arg4[%c0_38, %c0_39] : memref<64x1xf32, #tpu.memory_space<vmem>>, vector<64x1xf32>
    %c0_40 = arith.constant 0 : index
    %c0_41 = arith.constant 0 : index
    %52 = vector.load %arg15[%c0_40, %c0_41] : memref<64x64xf32, #tpu.memory_space<vmem>>, vector<64x64xf32>
    %cst_42 = arith.constant dense<0.000000e+00> : vector<64x64xf32>
    %53 = tpu.matmul %50, %52, %cst_42 {dimension_numbers = #tpu.dot_dimension_numbers<[1], [0], [0], [1], [0, 0, 1, 1], [], []>} : vector<64x64xf32>, vector<64x64xf32>, vector<64x64xf32> -> vector<64x64xf32>
    %c0_43 = arith.constant 0 : index
    %c0_44 = arith.constant 0 : index
    %54 = vector.load %arg16[%c0_43, %c0_44] : memref<1x64xf32, #tpu.memory_space<vmem>>, vector<1x64xf32>
    %55 = vector.broadcast %54 : vector<1x64xf32> to vector<64x64xf32>
    %56 = arith.addf %53, %55 : vector<64x64xf32>
    %57 = vector.broadcast %51 : vector<64x1xf32> to vector<64x64xf32>
    %58 = arith.mulf %57, %56 : vector<64x64xf32>
    %59 = vector.shape_cast %58 : vector<64x64xf32> to vector<8x8x64xf32>
    %cst_45 = arith.constant dense<0.000000e+00> : vector<8x64xf32>
    %60 = vector.multi_reduction <add>, %59, %cst_45 [1] : vector<8x8x64xf32> to vector<8x64xf32>
    %cst_46 = arith.constant dense<0.000000e+00> : vector<8x64xf32>
    %61 = vector.multi_reduction <add>, %59, %cst_46 [0] : vector<8x8x64xf32> to vector<8x64xf32>
    %62 = vector.extract_strided_slice %60 {offsets = [0, 0], sizes = [8, 32], strides = [1, 1]} : vector<8x64xf32> to vector<8x32xf32>
    %63 = vector.extract_strided_slice %61 {offsets = [0, 32], sizes = [8, 32], strides = [1, 1]} : vector<8x64xf32> to vector<8x32xf32>
    %64 = arith.addf %62, %63 : vector<8x32xf32>
    %c0_47 = arith.constant 0 : index
    %c0_48 = arith.constant 0 : index
    %65 = vector.load %arg17[%c0_47, %c0_48] : memref<32x96xf32, #tpu.memory_space<vmem>>, vector<32x96xf32>
    %cst_49 = arith.constant dense<0.000000e+00> : vector<8x96xf32>
    %66 = tpu.matmul %0, %65, %cst_49 {dimension_numbers = #tpu.dot_dimension_numbers<[1], [0], [0], [1], [0, 0, 1, 1], [], []>} : vector<8x32xf32>, vector<32x96xf32>, vector<8x96xf32> -> vector<8x96xf32>
    %c0_50 = arith.constant 0 : index
    %c0_51 = arith.constant 0 : index
    %67 = vector.load %arg19[%c0_50, %c0_51] : memref<1x96xf32, #tpu.memory_space<vmem>>, vector<1x96xf32>
    %68 = vector.broadcast %67 : vector<1x96xf32> to vector<8x96xf32>
    %69 = arith.addf %66, %68 : vector<8x96xf32>
    %c0_52 = arith.constant 0 : index
    %c0_53 = arith.constant 0 : index
    %70 = vector.load %arg18[%c0_52, %c0_53] : memref<32x96xf32, #tpu.memory_space<vmem>>, vector<32x96xf32>
    %cst_54 = arith.constant dense<0.000000e+00> : vector<8x96xf32>
    %71 = tpu.matmul %64, %70, %cst_54 {dimension_numbers = #tpu.dot_dimension_numbers<[1], [0], [0], [1], [0, 0, 1, 1], [], []>} : vector<8x32xf32>, vector<32x96xf32>, vector<8x96xf32> -> vector<8x96xf32>
    %c0_55 = arith.constant 0 : index
    %c0_56 = arith.constant 0 : index
    %72 = vector.load %arg20[%c0_55, %c0_56] : memref<1x96xf32, #tpu.memory_space<vmem>>, vector<1x96xf32>
    %73 = vector.broadcast %72 : vector<1x96xf32> to vector<8x96xf32>
    %74 = arith.addf %71, %73 : vector<8x96xf32>
    %75 = vector.extract_strided_slice %69 {offsets = [0, 0], sizes = [8, 32], strides = [1, 1]} : vector<8x96xf32> to vector<8x32xf32>
    %76 = vector.extract_strided_slice %74 {offsets = [0, 0], sizes = [8, 32], strides = [1, 1]} : vector<8x96xf32> to vector<8x32xf32>
    %77 = arith.addf %75, %76 : vector<8x32xf32>
    %78 = arith.negf %77 : vector<8x32xf32>
    %79 = math.exp %78 : vector<8x32xf32>
    %cst_57 = arith.constant 1.000000e+00 : f32
    %80 = vector.broadcast %cst_57 : f32 to vector<8x32xf32>
    %81 = arith.addf %80, %79 : vector<8x32xf32>
    %82 = arith.divf %80, %81 : vector<8x32xf32>
    %83 = vector.extract_strided_slice %69 {offsets = [0, 32], sizes = [8, 32], strides = [1, 1]} : vector<8x96xf32> to vector<8x32xf32>
    %84 = vector.extract_strided_slice %74 {offsets = [0, 32], sizes = [8, 32], strides = [1, 1]} : vector<8x96xf32> to vector<8x32xf32>
    %85 = arith.addf %83, %84 : vector<8x32xf32>
    %86 = arith.negf %85 : vector<8x32xf32>
    %87 = math.exp %86 : vector<8x32xf32>
    %cst_58 = arith.constant 1.000000e+00 : f32
    %88 = vector.broadcast %cst_58 : f32 to vector<8x32xf32>
    %89 = arith.addf %88, %87 : vector<8x32xf32>
    %90 = arith.divf %88, %89 : vector<8x32xf32>
    %91 = vector.extract_strided_slice %69 {offsets = [0, 64], sizes = [8, 32], strides = [1, 1]} : vector<8x96xf32> to vector<8x32xf32>
    %92 = vector.extract_strided_slice %74 {offsets = [0, 64], sizes = [8, 32], strides = [1, 1]} : vector<8x96xf32> to vector<8x32xf32>
    %93 = arith.mulf %82, %92 : vector<8x32xf32>
    %94 = arith.addf %91, %93 : vector<8x32xf32>
    %95 = math.tanh %94 : vector<8x32xf32>
    %cst_59 = arith.constant 1.000000e+00 : f32
    %96 = vector.broadcast %cst_59 : f32 to vector<8x32xf32>
    %97 = arith.subf %96, %90 : vector<8x32xf32>
    %98 = arith.mulf %97, %95 : vector<8x32xf32>
    %99 = arith.mulf %90, %64 : vector<8x32xf32>
    %100 = arith.addf %98, %99 : vector<8x32xf32>
    %c0_60 = arith.constant 0 : index
    %c0_61 = arith.constant 0 : index
    %101 = vector.load %arg21[%c0_60, %c0_61] : memref<8x32xf32, #tpu.memory_space<vmem>>, vector<8x32xf32>
    tpu.vector_store %arg21[%c0_60, %c0_61], %100 {strides = array<i32>} : memref<8x32xf32, #tpu.memory_space<vmem>>, vector<8x32xf32>,
    return
  }
}

</mosaic_0001>

<llo_original>
// kernel: raim_pallas.1
$region0: #{raim_pallas.1}
  #allocation0 [shape = 'u32[]', space=smem, size = 0x4, offset = 0x4, fixed_abs, tag = 'smem constant byte address 0x4 - core index']
  #allocation1 [shape = 'u32[72,128]{1,0:T(1,128)}', space=vmem, size = 0x9000, scoped, tag = 'internal scratch']
  %s0 = inlined_call_operand.vmem [shape: f32[8,32], index: 0, kind: input, shape index: {}]
  %s1 = inlined_call_operand.vmem [shape: f32[64,64], index: 1, kind: input, shape index: {}]
  %s2 = inlined_call_operand.vmem [shape: f32[64,32], index: 2, kind: input, shape index: {}]
  %s3 = inlined_call_operand.vmem [shape: f32[64,1], index: 3, kind: input, shape index: {}]
  %s4 = inlined_call_operand.vmem [shape: f32[64,1], index: 4, kind: input, shape index: {}]
  %s5 = inlined_call_operand.vmem [shape: f32[1,32], index: 5, kind: input, shape index: {}]
  %s6 = inlined_call_operand.vmem [shape: f32[8,32], index: 6, kind: input, shape index: {}]
  %s7 = inlined_call_operand.vmem [shape: f32[32,8], index: 7, kind: input, shape index: {}]
  %s8 = inlined_call_operand.vmem [shape: f32[64,32], index: 8, kind: input, shape index: {}]
  %s9 = inlined_call_operand.vmem [shape: f32[1,32], index: 9, kind: input, shape index: {}]
  %s10 = inlined_call_operand.vmem [shape: f32[32,32], index: 10, kind: input, shape index: {}]
  %s11 = inlined_call_operand.vmem [shape: f32[1,32], index: 11, kind: input, shape index: {}]
  %s12 = inlined_call_operand.vmem [shape: f32[32,64], index: 12, kind: input, shape index: {}]
  %s13 = inlined_call_operand.vmem [shape: f32[32,64], index: 13, kind: input, shape index: {}]
  %s14 = inlined_call_operand.vmem [shape: f32[1,64], index: 14, kind: input, shape index: {}]
  %s15 = inlined_call_operand.vmem [shape: f32[64,64], index: 15, kind: input, shape index: {}]
  %s16 = inlined_call_operand.vmem [shape: f32[1,64], index: 16, kind: input, shape index: {}]
  %s17 = inlined_call_operand.vmem [shape: f32[32,96], index: 17, kind: input, shape index: {}]
  %s18 = inlined_call_operand.vmem [shape: f32[32,96], index: 18, kind: input, shape index: {}]
  %s19 = inlined_call_operand.vmem [shape: f32[1,96], index: 19, kind: input, shape index: {}]
  %s20 = inlined_call_operand.vmem [shape: f32[1,96], index: 20, kind: input, shape index: {}]
  %s21 = inlined_call_operand.hbm [shape: f32[8,32], index: 21, kind: output, shape index: {}]
  %s22 = sld [smem:[#allocation0]]
  $region94: #{raim_pallas.1} parent=0
    _
  %s24 = ssub.s32 1, %s22
  %s25 = scalar_select 0, %s24, %s22
  $region1: #{raim_pallas.1} parent=0
    #allocation2 [shape = 'u8[4096]{0}', space=vmem, size = 0x1000, scoped, tag = 'output window, operand 0, single buffered']
    #allocation3 [shape = 's32[1]{0}', space=sflag, size = 0x4, scoped, tag = 'scoped memory for raim_pallas.1']
    %26 = vsyncpa [#allocation3], 0
    // Predicated region
    $region2: #{raim_pallas.1} parent=1 // pred_check
      _
    $region3: #{raim_pallas.1} parent=1 // pred_check_branch
      %28 = sbr.rel (0) target = $region5
    $region4: #{raim_pallas.1} parent=1 // pred_region
      _
    $region5: #{raim_pallas.1} parent=1 // pred_fallthru
      _
    // Predicated region
    $region6: #{raim_pallas.1} parent=1 // pred_check
      _
    $region7: #{raim_pallas.1} parent=1 // pred_check_branch
      %30 = sbr.rel (0) target = $region9
    $region8: #{raim_pallas.1} parent=1 // pred_region
      _
    $region9: #{raim_pallas.1} parent=1 // pred_fallthru
      _
    // Predicated region
    $region10: #{raim_pallas.1} parent=1 // pred_check
      _
    $region11: #{raim_pallas.1} parent=1 // pred_check_branch
      %32 = sbr.rel (0) target = $region13
    $region12: #{raim_pallas.1} parent=1 // pred_region
      _
    $region13: #{raim_pallas.1} parent=1 // pred_fallthru
      _
    // Predicated region
    $region14: #{raim_pallas.1} parent=1 // pred_check
      _
    $region15: #{raim_pallas.1} parent=1 // pred_check_branch
      %34 = sbr.rel (0) target = $region17
    $region16: #{raim_pallas.1} parent=1 // pred_region
      _
    $region17: #{raim_pallas.1} parent=1 // pred_fallthru
      _
    // Predicated region
    $region18: #{raim_pallas.1} parent=1 // pred_check
      _
    $region19: #{raim_pallas.1} parent=1 // pred_check_branch
      %36 = sbr.rel (0) target = $region21
    $region20: #{raim_pallas.1} parent=1 // pred_region
      _
    $region21: #{raim_pallas.1} parent=1 // pred_fallthru
      _
    // Predicated region
    $region22: #{raim_pallas.1} parent=1 // pred_check
      _
    $region23: #{raim_pallas.1} parent=1 // pred_check_branch
      %38 = sbr.rel (0) target = $region25
    $region24: #{raim_pallas.1} parent=1 // pred_region
      _
    $region25: #{raim_pallas.1} parent=1 // pred_fallthru
      _
    // Predicated region
    $region26: #{raim_pallas.1} parent=1 // pred_check
      _
    $region27: #{raim_pallas.1} parent=1 // pred_check_branch
      %40 = sbr.rel (0) target = $region29
    $region28: #{raim_pallas.1} parent=1 // pred_region
      _
    $region29: #{raim_pallas.1} parent=1 // pred_fallthru
      _
    // Predicated region
    $region30: #{raim_pallas.1} parent=1 // pred_check
      _
    $region31: #{raim_pallas.1} parent=1 // pred_check_branch
      %42 = sbr.rel (0) target = $region33
    $region32: #{raim_pallas.1} parent=1 // pred_region
      _
    $region33: #{raim_pallas.1} parent=1 // pred_fallthru
      _
    // Predicated region
    $region34: #{raim_pallas.1} parent=1 // pred_check
      _
    $region35: #{raim_pallas.1} parent=1 // pred_check_branch
      %44 = sbr.rel (0) target = $region37
    $region36: #{raim_pallas.1} parent=1 // pred_region
      _
    $region37: #{raim_pallas.1} parent=1 // pred_fallthru
      _
    // Predicated region
    $region38: #{raim_pallas.1} parent=1 // pred_check
      _
    $region39: #{raim_pallas.1} parent=1 // pred_check_branch
      %46 = sbr.rel (0) target = $region41
    $region40: #{raim_pallas.1} parent=1 // pred_region
      _
    $region41: #{raim_pallas.1} parent=1 // pred_fallthru
      _
    // Predicated region
    $region42: #{raim_pallas.1} parent=1 // pred_check
      _
    $region43: #{raim_pallas.1} parent=1 // pred_check_branch
      %48 = sbr.rel (0) target = $region45
    $region44: #{raim_pallas.1} parent=1 // pred_region
      _
    $region45: #{raim_pallas.1} parent=1 // pred_fallthru
      _
    // Predicated region
    $region46: #{raim_pallas.1} parent=1 // pred_check
      _
    $region47: #{raim_pallas.1} parent=1 // pred_check_branch
      %50 = sbr.rel (0) target = $region49
    $region48: #{raim_pallas.1} parent=1 // pred_region
      _
    $region49: #{raim_pallas.1} parent=1 // pred_fallthru
      _
    // Predicated region
    $region50: #{raim_pallas.1} parent=1 // pred_check
      _
    $region51: #{raim_pallas.1} parent=1 // pred_check_branch
      %52 = sbr.rel (0) target = $region53
    $region52: #{raim_pallas.1} parent=1 // pred_region
      _
    $region53: #{raim_pallas.1} parent=1 // pred_fallthru
      _
    // Predicated region
    $region54: #{raim_pallas.1} parent=1 // pred_check
      _
    $region55: #{raim_pallas.1} parent=1 // pred_check_branch
      %54 = sbr.rel (0) target = $region57
    $region56: #{raim_pallas.1} parent=1 // pred_region
      _
    $region57: #{raim_pallas.1} parent=1 // pred_fallthru
      _
    // Predicated region
    $region58: #{raim_pallas.1} parent=1 // pred_check
      _
    $region59: #{raim_pallas.1} parent=1 // pred_check_branch
      %56 = sbr.rel (0) target = $region61
    $region60: #{raim_pallas.1} parent=1 // pred_region
      _
    $region61: #{raim_pallas.1} parent=1 // pred_fallthru
      _
    // Predicated region
    $region62: #{raim_pallas.1} parent=1 // pred_check
      _
    $region63: #{raim_pallas.1} parent=1 // pred_check_branch
      %58 = sbr.rel (0) target = $region65
    $region64: #{raim_pallas.1} parent=1 // pred_region
      _
    $region65: #{raim_pallas.1} parent=1 // pred_fallthru
      _
    // Predicated region
    $region66: #{raim_pallas.1} parent=1 // pred_check
      _
    $region67: #{raim_pallas.1} parent=1 // pred_check_branch
      %60 = sbr.rel (0) target = $region69
    $region68: #{raim_pallas.1} parent=1 // pred_region
      _
    $region69: #{raim_pallas.1} parent=1 // pred_fallthru
      _
    // Predicated region
    $region70: #{raim_pallas.1} parent=1 // pred_check
      _
    $region71: #{raim_pallas.1} parent=1 // pred_check_branch
      %62 = sbr.rel (0) target = $region73
    $region72: #{raim_pallas.1} parent=1 // pred_region
      _
    $region73: #{raim_pallas.1} parent=1 // pred_fallthru
      _
    // Predicated region
    $region74: #{raim_pallas.1} parent=1 // pred_check
      _
    $region75: #{raim_pallas.1} parent=1 // pred_check_branch
      %64 = sbr.rel (0) target = $region77
    $region76: #{raim_pallas.1} parent=1 // pred_region
      _
    $region77: #{raim_pallas.1} parent=1 // pred_fallthru
      _
    // Predicated region
    $region78: #{raim_pallas.1} parent=1 // pred_check
      _
    $region79: #{raim_pallas.1} parent=1 // pred_check_branch
      %66 = sbr.rel (0) target = $region81
    $region80: #{raim_pallas.1} parent=1 // pred_region
      _
    $region81: #{raim_pallas.1} parent=1 // pred_fallthru
      _
    // Predicated region
    $region82: #{raim_pallas.1} parent=1 // pred_check
      _
    $region83: #{raim_pallas.1} parent=1 // pred_check_branch
      %68 = sbr.rel (0) target = $region85
    $region84: #{raim_pallas.1} parent=1 // pred_region
      _
    $region85: #{raim_pallas.1} parent=1 // pred_fallthru
      _
    %v69 = vld [vmem:[%s0] sm:$0xff]
    %v70 = vld [vmem:[%s1] sm:$0xff]
    %v71 = vld [vmem:[%s1 + $0x8] sm:$0xff]
    %v72 = vld [vmem:[%s1 + $0x10] sm:$0xff]
    %v73 = vld [vmem:[%s1 + $0x18] sm:$0xff]
    %v74 = vld [vmem:[%s1 + $0x20] sm:$0xff]
    %v75 = vld [vmem:[%s1 + $0x28] sm:$0xff]
    %v76 = vld [vmem:[%s1 + $0x30] sm:$0xff]
    %v77 = vld [vmem:[%s1 + $0x38] sm:$0xff]
    %v78 = vld [vmem:[%s8] sm:$0xff]
    %v79 = vld [vmem:[%s8 + $0x8] sm:$0xff]
    %v80 = vld [vmem:[%s8 + $0x10] sm:$0xff]
    %v81 = vld [vmem:[%s8 + $0x18] sm:$0xff]
    %v82 = vld [vmem:[%s8 + $0x20] sm:$0xff]
    %v83 = vld [vmem:[%s8 + $0x28] sm:$0xff]
    %v84 = vld [vmem:[%s8 + $0x30] sm:$0xff]
    %v85 = vld [vmem:[%s8 + $0x38] sm:$0xff]
    %v86 = vld [vmem:[%s9] sm:$0x1]
    %v88 = vperm.slane %v86, 0
    %vm90 = vcmask 523264
    %v92 = vsel %vm90, %v70, 0
    %v95 = vsel %vm90, %v71, 0
    %v98 = vsel %vm90, %v72, 0
    %v101 = vsel %vm90, %v73, 0
    %v104 = vsel %vm90, %v74, 0
    %v107 = vsel %vm90, %v75, 0
    %v110 = vsel %vm90, %v76, 0
    %v113 = vsel %vm90, %v77, 0
    %115 = vmatpush.msra.mxu0 0.0
    %116 = vmatpush.msra.mxu0 0.0
    %117 = vmatpush.msra.mxu0 0.0
    %118 = vmatpush.msra.mxu0 0.0
    %119 = vmatpush.msra.mxu0 0.0
    %120 = vmatpush.msra.mxu0 0.0
    %121 = vmatpush.msra.mxu0 0.0
    %122 = vmatpush.msra.mxu0 0.0
    %123 = vmatpush.msra.mxu0 %v85
    %124 = vmatpush.msra.mxu0 %v84
    %125 = vmatpush.msra.mxu0 %v83
    %126 = vmatpush.msra.mxu0 %v82
    %127 = vmatpush.msra.mxu0 %v81
    %128 = vmatpush.msra.mxu0 %v80
    %129 = vmatpush.msra.mxu0 %v79
    %130 = vmatpush.msra.mxu0 %v78
    %131 = vmatmul.f32.gmra.mxu0 %v92
    %v132 = vpop.f32.mrf.mxu0
    %v133 = vadd.f32 %v88, %v132
    %134 = vmatmul.f32.gmra.mxu0 %v95
    %v135 = vpop.f32.mrf.mxu0
    %v136 = vadd.f32 %v88, %v135
    %137 = vmatmul.f32.gmra.mxu0 %v98
    %v138 = vpop.f32.mrf.mxu0
    %v139 = vadd.f32 %v88, %v138
    %140 = vmatmul.f32.gmra.mxu0 %v101
    %v141 = vpop.f32.mrf.mxu0
    %v142 = vadd.f32 %v88, %v141
    %143 = vmatmul.f32.gmra.mxu0 %v104
    %v144 = vpop.f32.mrf.mxu0
    %v145 = vadd.f32 %v88, %v144
    %146 = vmatmul.f32.gmra.mxu0 %v107
    %v147 = vpop.f32.mrf.mxu0
    %v148 = vadd.f32 %v88, %v147
    %149 = vmatmul.f32.gmra.mxu0 %v110
    %v150 = vpop.f32.mrf.mxu0
    %v151 = vadd.f32 %v88, %v150
    %152 = vmatmul.f32.gmra.mxu0 %v113
    %v153 = vpop.f32.mrf.mxu0
    %v154 = vadd.f32 %v88, %v153
    %155 = vdwg.mxu0
    %v156 = vmax.f32 %v133, 0.0
    %v157 = vmax.f32 %v136, 0.0
    %v158 = vmax.f32 %v139, 0.0
    %v159 = vmax.f32 %v142, 0.0
    %v160 = vmax.f32 %v145, 0.0
    %v161 = vmax.f32 %v148, 0.0
    %v162 = vmax.f32 %v151, 0.0
    %v163 = vmax.f32 %v154, 0.0
    %v164 = vld [vmem:[%s10] sm:$0xff]
    %v165 = vld [vmem:[%s10 + $0x8] sm:$0xff]
    %v166 = vld [vmem:[%s10 + $0x10] sm:$0xff]
    %v167 = vld [vmem:[%s10 + $0x18] sm:$0xff]
    %v168 = vld [vmem:[%s11] sm:$0x1]
    %v170 = vperm.slane %v168, 0
    %vm172 = vcmask 261120
    %v174 = vsel %vm172, %v156, 0
    %v177 = vsel %vm172, %v157, 0
    %v180 = vsel %vm172, %v158, 0
    %v183 = vsel %vm172, %v159, 0
    %v186 = vsel %vm172, %v160, 0
    %v189 = vsel %vm172, %v161, 0
    %v192 = vsel %vm172, %v162, 0
    %v195 = vsel %vm172, %v163, 0
    %197 = vmatpush.msra.mxu0 0.0
    %198 = vmatpush.msra.mxu0 0.0
    %199 = vmatpush.msra.mxu0 0.0
    %200 = vmatpush.msra.mxu0 0.0
    %201 = vmatpush.msra.mxu0 0.0
    %202 = vmatpush.msra.mxu0 0.0
    %203 = vmatpush.msra.mxu0 0.0
    %204 = vmatpush.msra.mxu0 0.0
    %205 = vmatpush.msra.mxu0 0.0
    %206 = vmatpush.msra.mxu0 0.0
    %207 = vmatpush.msra.mxu0 0.0
    %208 = vmatpush.msra.mxu0 0.0
    %209 = vmatpush.msra.mxu0 %v167
    %210 = vmatpush.msra.mxu0 %v166
    %211 = vmatpush.msra.mxu0 %v165
    %212 = vmatpush.msra.mxu0 %v164
    %213 = vmatmul.f32.gmra.mxu0 %v174
    %v214 = vpop.f32.mrf.mxu0
    %v215 = vadd.f32 %v170, %v214
    %216 = vmatmul.f32.gmra.mxu0 %v177
    %v217 = vpop.f32.mrf.mxu0
    %v218 = vadd.f32 %v170, %v217
    %219 = vmatmul.f32.gmra.mxu0 %v180
    %v220 = vpop.f32.mrf.mxu0
    %v221 = vadd.f32 %v170, %v220
    %222 = vmatmul.f32.gmra.mxu0 %v183
    %v223 = vpop.f32.mrf.mxu0
    %v224 = vadd.f32 %v170, %v223
    %225 = vmatmul.f32.gmra.mxu0 %v186
    %v226 = vpop.f32.mrf.mxu0
    %v227 = vadd.f32 %v170, %v226
    %228 = vmatmul.f32.gmra.mxu0 %v189
    %v229 = vpop.f32.mrf.mxu0
    %v230 = vadd.f32 %v170, %v229
    %231 = vmatmul.f32.gmra.mxu0 %v192
    %v232 = vpop.f32.mrf.mxu0
    %v233 = vadd.f32 %v170, %v232
    %234 = vmatmul.f32.gmra.mxu0 %v195
    %v235 = vpop.f32.mrf.mxu0
    %v236 = vadd.f32 %v170, %v235
    %237 = vdwg.mxu0
    %v238 = vld [vmem:[%s7] sm:$0xff]
    %v239 = vld [vmem:[%s7 + $0x8] sm:$0xff]
    %v240 = vld [vmem:[%s7 + $0x10] sm:$0xff]
    %v241 = vld [vmem:[%s7 + $0x18] sm:$0xff]
    %v243 = vsel %vm172, %v215, 0
    %v246 = vsel %vm172, %v218, 0
    %v249 = vsel %vm172, %v221, 0
    %v252 = vsel %vm172, %v224, 0
    %v255 = vsel %vm172, %v227, 0
    %v258 = vsel %vm172, %v230, 0
    %v261 = vsel %vm172, %v233, 0
    %v264 = vsel %vm172, %v236, 0
    %266 = vmatpush.msra.mxu0 0.0
    %267 = vmatpush.msra.mxu0 0.0
    %268 = vmatpush.msra.mxu0 0.0
    %269 = vmatpush.msra.mxu0 0.0
    %270 = vmatpush.msra.mxu0 0.0
    %271 = vmatpush.msra.mxu0 0.0
    %272 = vmatpush.msra.mxu0 0.0
    %273 = vmatpush.msra.mxu0 0.0
    %274 = vmatpush.msra.mxu0 0.0
    %275 = vmatpush.msra.mxu0 0.0
    %276 = vmatpush.msra.mxu0 0.0
    %277 = vmatpush.msra.mxu0 0.0
    %278 = vmatpush.msra.mxu0 %v241
    %279 = vmatpush.msra.mxu0 %v240
    %280 = vmatpush.msra.mxu0 %v239
    %281 = vmatpush.msra.mxu0 %v238
    %282 = vmatmul.f32.gmra.mxu0 %v243
    %v283 = vpop.f32.mrf.mxu0
    %v284 = vadd.f32 0.0, %v283
    %285 = vmatmul.f32.gmra.mxu0 %v246
    %v286 = vpop.f32.mrf.mxu0
    %v287 = vadd.f32 0.0, %v286
    %288 = vmatmul.f32.gmra.mxu0 %v249
    %v289 = vpop.f32.mrf.mxu0
    %v290 = vadd.f32 0.0, %v289
    %291 = vmatmul.f32.gmra.mxu0 %v252
    %v292 = vpop.f32.mrf.mxu0
    %v293 = vadd.f32 0.0, %v292
    %294 = vmatmul.f32.gmra.mxu0 %v255
    %v295 = vpop.f32.mrf.mxu0
    %v296 = vadd.f32 0.0, %v295
    %297 = vmatmul.f32.gmra.mxu0 %v258
    %v298 = vpop.f32.mrf.mxu0
    %v299 = vadd.f32 0.0, %v298
    %300 = vmatmul.f32.gmra.mxu0 %v261
    %v301 = vpop.f32.mrf.mxu0
    %v302 = vadd.f32 0.0, %v301
    %303 = vmatmul.f32.gmra.mxu0 %v264
    %v304 = vpop.f32.mrf.mxu0
    %v305 = vadd.f32 0.0, %v304
    %306 = vdwg.mxu0
    %v307 = vmul.f32 %v284, 0.17677669
    %v308 = vmul.f32 %v287, 0.17677669
    %v309 = vmul.f32 %v290, 0.17677669
    %v310 = vmul.f32 %v293, 0.17677669
    %v311 = vmul.f32 %v296, 0.17677669
    %v312 = vmul.f32 %v299, 0.17677669
    %v313 = vmul.f32 %v302, 0.17677669
    %v314 = vmul.f32 %v305, 0.17677669
    %vm315 = vcmask 64512
    %v316 = vsel %vm315, %v307, -inf
    %317 = vmax.xlane.f32.xlu0 %v316
    %v318 = vpop.xlane.xlu0 %317
    %v319 = vsel %vm315, %v308, -inf
    %320 = vmax.xlane.f32.xlu0 %v319
    %v321 = vpop.xlane.xlu0 %320
    %v322 = vsel %vm315, %v309, -inf
    %323 = vmax.xlane.f32.xlu0 %v322
    %v324 = vpop.xlane.xlu0 %323
    %v325 = vsel %vm315, %v310, -inf
    %326 = vmax.xlane.f32.xlu0 %v325
    %v327 = vpop.xlane.xlu0 %326
    %v328 = vsel %vm315, %v311, -inf
    %329 = vmax.xlane.f32.xlu0 %v328
    %v330 = vpop.xlane.xlu0 %329
    %v331 = vsel %vm315, %v312, -inf
    %332 = vmax.xlane.f32.xlu0 %v331
    %v333 = vpop.xlane.xlu0 %332
    %v334 = vsel %vm315, %v313, -inf
    %335 = vmax.xlane.f32.xlu0 %v334
    %v336 = vpop.xlane.xlu0 %335
    %v337 = vsel %vm315, %v314, -inf
    %338 = vmax.xlane.f32.xlu0 %v337
    %v339 = vpop.xlane.xlu0 %338
    %v340 = vsub.f32 %v307, %v318
    %v341 = vsub.f32 %v308, %v321
    %v342 = vsub.f32 %v309, %v324
    %v343 = vsub.f32 %v310, %v327
    %v344 = vsub.f32 %v311, %v330
    %v345 = vsub.f32 %v312, %v333
    %v346 = vsub.f32 %v313, %v336
    %v347 = vsub.f32 %v314, %v339
    %v348 = vmul.f32 %v340, 1.442695
    %v349 = vpow.pop %v348
    %v350 = vmul.f32 %v341, 1.442695
    %v351 = vpow.pop %v350
    %v352 = vmul.f32 %v342, 1.442695
    %v353 = vpow.pop %v352
    %v354 = vmul.f32 %v343, 1.442695
    %v355 = vpow.pop %v354
    %v356 = vmul.f32 %v344, 1.442695
    %v357 = vpow.pop %v356
    %v358 = vmul.f32 %v345, 1.442695
    %v359 = vpow.pop %v358
    %v360 = vmul.f32 %v346, 1.442695
    %v361 = vpow.pop %v360
    %v362 = vmul.f32 %v347, 1.442695
    %v363 = vpow.pop %v362
    %v364 = vsel %vm315, %v349, 0.0
    %365 = vadd.xlane.f32.xlu0 %v364
    %v366 = vpop.xlane.xlu0 %365
    %v367 = vsel %vm315, %v351, 0.0
    %368 = vadd.xlane.f32.xlu0 %v367
    %v369 = vpop.xlane.xlu0 %368
    %v370 = vsel %vm315, %v353, 0.0
    %371 = vadd.xlane.f32.xlu0 %v370
    %v372 = vpop.xlane.xlu0 %371
    %v373 = vsel %vm315, %v355, 0.0
    %374 = vadd.xlane.f32.xlu0 %v373
    %v375 = vpop.xlane.xlu0 %374
    %v376 = vsel %vm315, %v357, 0.0
    %377 = vadd.xlane.f32.xlu0 %v376
    %v378 = vpop.xlane.xlu0 %377
    %v379 = vsel %vm315, %v359, 0.0
    %380 = vadd.xlane.f32.xlu0 %v379
    %v381 = vpop.xlane.xlu0 %380
    %v382 = vsel %vm315, %v361, 0.0
    %383 = vadd.xlane.f32.xlu0 %v382
    %v384 = vpop.xlane.xlu0 %383
    %v385 = vsel %vm315, %v363, 0.0
    %386 = vadd.xlane.f32.xlu0 %v385
    %v387 = vpop.xlane.xlu0 %386
    %v388 = vrcp.pop %v366
    %v389 = vrcp.pop %v369
    %v390 = vrcp.pop %v372
    %v391 = vrcp.pop %v375
    %v392 = vrcp.pop %v378
    %v393 = vrcp.pop %v381
    %v394 = vrcp.pop %v384
    %v395 = vrcp.pop %v387
    %v396 = vmul.f32 %v349, %v388
    %v397 = vmul.f32 %v351, %v389
    %v398 = vmul.f32 %v353, %v390
    %v399 = vmul.f32 %v355, %v391
    %v400 = vmul.f32 %v357, %v392
    %v401 = vmul.f32 %v359, %v393
    %v402 = vmul.f32 %v361, %v394
    %v403 = vmul.f32 %v363, %v395
    %v404 = vld [vmem:[%s3] sm:$0xff]
    %v405 = vld [vmem:[%s3 + $0x8] sm:$0xff]
    %v406 = vld [vmem:[%s3 + $0x10] sm:$0xff]
    %v407 = vld [vmem:[%s3 + $0x18] sm:$0xff]
    %v408 = vld [vmem:[%s3 + $0x20] sm:$0xff]
    %v409 = vld [vmem:[%s3 + $0x28] sm:$0xff]
    %v410 = vld [vmem:[%s3 + $0x30] sm:$0xff]
    %v411 = vld [vmem:[%s3 + $0x38] sm:$0xff]
    %v412 = vsub.f32 1.0, %v404
    %v413 = vsub.f32 1.0, %v405
    %v414 = vsub.f32 1.0, %v406
    %v415 = vsub.f32 1.0, %v407
    %v416 = vsub.f32 1.0, %v408
    %v417 = vsub.f32 1.0, %v409
    %v418 = vsub.f32 1.0, %v410
    %v419 = vsub.f32 1.0, %v411
    %v420 = vld [vmem:[%s5] sm:$0x1]
    %422 = vset.pattern.permute.xlu0 0
    %423 = vperm.xlu0 %422, %v412
    %v424 = vpop.permute.xlu0 %423
    %427 = vset.pattern.permute.xlu0 0
    %428 = vperm.xlu0 %427, %v413
    %v429 = vpop.permute.xlu0 %428
    %432 = vset.pattern.permute.xlu0 0
    %433 = vperm.xlu0 %432, %v414
    %v434 = vpop.permute.xlu0 %433
    %437 = vset.pattern.permute.xlu0 0
    %438 = vperm.xlu0 %437, %v415
    %v439 = vpop.permute.xlu0 %438
    %442 = vset.pattern.permute.xlu0 0
    %443 = vperm.xlu0 %442, %v416
    %v444 = vpop.permute.xlu0 %443
    %447 = vset.pattern.permute.xlu0 0
    %448 = vperm.xlu0 %447, %v417
    %v449 = vpop.permute.xlu0 %448
    %452 = vset.pattern.permute.xlu0 0
    %453 = vperm.xlu0 %452, %v418
    %v454 = vpop.permute.xlu0 %453
    %457 = vset.pattern.permute.xlu0 0
    %458 = vperm.xlu0 %457, %v419
    %v459 = vpop.permute.xlu0 %458
    %v462 = vperm.slane %v420, 0
    %v464 = vmul.f32 %v424, %v462
    %v465 = vmul.f32 %v429, %v462
    %v466 = vmul.f32 %v434, %v462
    %v467 = vmul.f32 %v439, %v462
    %v468 = vmul.f32 %v444, %v462
    %v469 = vmul.f32 %v449, %v462
    %v470 = vmul.f32 %v454, %v462
    %v471 = vmul.f32 %v459, %v462
    %473 = vset.pattern.permute.xlu0 0
    %474 = vperm.xlu0 %473, %v404
    %v475 = vpop.permute.xlu0 %474
    %478 = vset.pattern.permute.xlu0 0
    %479 = vperm.xlu0 %478, %v405
    %v480 = vpop.permute.xlu0 %479
    %483 = vset.pattern.permute.xlu0 0
    %484 = vperm.xlu0 %483, %v406
    %v485 = vpop.permute.xlu0 %484
    %488 = vset.pattern.permute.xlu0 0
    %489 = vperm.xlu0 %488, %v407
    %v490 = vpop.permute.xlu0 %489
    %493 = vset.pattern.permute.xlu0 0
    %494 = vperm.xlu0 %493, %v408
    %v495 = vpop.permute.xlu0 %494
    %498 = vset.pattern.permute.xlu0 0
    %499 = vperm.xlu0 %498, %v409
    %v500 = vpop.permute.xlu0 %499
    %503 = vset.pattern.permute.xlu0 0
    %504 = vperm.xlu0 %503, %v410
    %v505 = vpop.permute.xlu0 %504
    %508 = vset.pattern.permute.xlu0 0
    %509 = vperm.xlu0 %508, %v411
    %v510 = vpop.permute.xlu0 %509
    %v512 = vmul.f32 %v475, %v396
    %v513 = vmul.f32 %v480, %v397
    %v514 = vmul.f32 %v485, %v398
    %v515 = vmul.f32 %v490, %v399
    %v516 = vmul.f32 %v495, %v400
    %v517 = vmul.f32 %v500, %v401
    %v518 = vmul.f32 %v505, %v402
    %v519 = vmul.f32 %v510, %v403
    %v520 = vld [vmem:[%s6] sm:$0xff]
    %v522 = vsel %vm315, %v512, 0
    %v525 = vsel %vm315, %v513, 0
    %v528 = vsel %vm315, %v514, 0
    %v531 = vsel %vm315, %v515, 0
    %v534 = vsel %vm315, %v516, 0
    %v537 = vsel %vm315, %v517, 0
    %v540 = vsel %vm315, %v518, 0
    %v543 = vsel %vm315, %v519, 0
    %545 = vmatpush.msra.mxu0 0.0
    %546 = vmatpush.msra.mxu0 0.0
    %547 = vmatpush.msra.mxu0 0.0
    %548 = vmatpush.msra.mxu0 0.0
    %549 = vmatpush.msra.mxu0 0.0
    %550 = vmatpush.msra.mxu0 0.0
    %551 = vmatpush.msra.mxu0 0.0
    %552 = vmatpush.msra.mxu0 0.0
    %553 = vmatpush.msra.mxu0 0.0
    %554 = vmatpush.msra.mxu0 0.0
    %555 = vmatpush.msra.mxu0 0.0
    %556 = vmatpush.msra.mxu0 0.0
    %557 = vmatpush.msra.mxu0 0.0
    %558 = vmatpush.msra.mxu0 0.0
    %559 = vmatpush.msra.mxu0 0.0
    %560 = vmatpush.msra.mxu0 %v520
    %561 = vmatmul.f32.gmra.mxu0 %v522
    %v562 = vpop.f32.mrf.mxu0
    %v563 = vadd.f32 0.0, %v562
    %564 = vmatmul.f32.gmra.mxu0 %v525
    %v565 = vpop.f32.mrf.mxu0
    %v566 = vadd.f32 0.0, %v565
    %567 = vmatmul.f32.gmra.mxu0 %v528
    %v568 = vpop.f32.mrf.mxu0
    %v569 = vadd.f32 0.0, %v568
    %570 = vmatmul.f32.gmra.mxu0 %v531
    %v571 = vpop.f32.mrf.mxu0
    %v572 = vadd.f32 0.0, %v571
    %573 = vmatmul.f32.gmra.mxu0 %v534
    %v574 = vpop.f32.mrf.mxu0
    %v575 = vadd.f32 0.0, %v574
    %576 = vmatmul.f32.gmra.mxu0 %v537
    %v577 = vpop.f32.mrf.mxu0
    %v578 = vadd.f32 0.0, %v577
    %579 = vmatmul.f32.gmra.mxu0 %v540
    %v580 = vpop.f32.mrf.mxu0
    %v581 = vadd.f32 0.0, %v580
    %582 = vmatmul.f32.gmra.mxu0 %v543
    %v583 = vpop.f32.mrf.mxu0
    %v584 = vadd.f32 0.0, %v583
    %585 = vdwg.mxu0
    %v586 = vadd.f32 %v464, %v563
    %v587 = vadd.f32 %v465, %v566
    %v588 = vadd.f32 %v466, %v569
    %v589 = vadd.f32 %v467, %v572
    %v590 = vadd.f32 %v468, %v575
    %v591 = vadd.f32 %v469, %v578
    %v592 = vadd.f32 %v470, %v581
    %v593 = vadd.f32 %v471, %v584
    %v594 = vld [vmem:[%s2] sm:$0xff]
    %v595 = vld [vmem:[%s2 + $0x8] sm:$0xff]
    %v596 = vld [vmem:[%s2 + $0x10] sm:$0xff]
    %v597 = vld [vmem:[%s2 + $0x18] sm:$0xff]
    %v598 = vld [vmem:[%s2 + $0x20] sm:$0xff]
    %v599 = vld [vmem:[%s2 + $0x28] sm:$0xff]
    %v600 = vld [vmem:[%s2 + $0x30] sm:$0xff]
    %v601 = vld [vmem:[%s2 + $0x38] sm:$0xff]
    %v602 = vld [vmem:[%s12] sm:$0xff]
    %v603 = vld [vmem:[%s12 + $0x8] sm:$0xff]
    %v604 = vld [vmem:[%s12 + $0x10] sm:$0xff]
    %v605 = vld [vmem:[%s12 + $0x18] sm:$0xff]
    %v606 = vld [vmem:[%s13] sm:$0xff]
    %v607 = vld [vmem:[%s13 + $0x8] sm:$0xff]
    %v608 = vld [vmem:[%s13 + $0x10] sm:$0xff]
    %v609 = vld [vmem:[%s13 + $0x18] sm:$0xff]
    %v611 = vsel %vm172, %v586, 0
    %v614 = vsel %vm172, %v587, 0
    %v617 = vsel %vm172, %v588, 0
    %v620 = vsel %vm172, %v589, 0
    %v623 = vsel %vm172, %v590, 0
    %v626 = vsel %vm172, %v591, 0
    %v629 = vsel %vm172, %v592, 0
    %v632 = vsel %vm172, %v593, 0
    %634 = vmatpush.msra.mxu0 0.0
    %635 = vmatpush.msra.mxu0 0.0
    %636 = vmatpush.msra.mxu0 0.0
    %637 = vmatpush.msra.mxu0 0.0
    %638 = vmatpush.msra.mxu0 0.0
    %639 = vmatpush.msra.mxu0 0.0
    %640 = vmatpush.msra.mxu0 0.0
    %641 = vmatpush.msra.mxu0 0.0
    %642 = vmatpush.msra.mxu0 0.0
    %643 = vmatpush.msra.mxu0 0.0
    %644 = vmatpush.msra.mxu0 0.0
    %645 = vmatpush.msra.mxu0 0.0
    %646 = vmatpush.msra.mxu0 %v609
    %647 = vmatpush.msra.mxu0 %v608
    %648 = vmatpush.msra.mxu0 %v607
    %649 = vmatpush.msra.mxu0 %v606
    %650 = vmatmul.f32.gmra.mxu0 %v611
    %v651 = vpop.f32.mrf.mxu0
    %v652 = vadd.f32 0.0, %v651
    %653 = vmatmul.f32.gmra.mxu0 %v614
    %v654 = vpop.f32.mrf.mxu0
    %v655 = vadd.f32 0.0, %v654
    %656 = vmatmul.f32.gmra.mxu0 %v617
    %v657 = vpop.f32.mrf.mxu0
    %v658 = vadd.f32 0.0, %v657
    %659 = vmatmul.f32.gmra.mxu0 %v620
    %v660 = vpop.f32.mrf.mxu0
    %v661 = vadd.f32 0.0, %v660
    %662 = vmatmul.f32.gmra.mxu0 %v623
    %v663 = vpop.f32.mrf.mxu0
    %v664 = vadd.f32 0.0, %v663
    %665 = vmatmul.f32.gmra.mxu0 %v626
    %v666 = vpop.f32.mrf.mxu0
    %v667 = vadd.f32 0.0, %v666
    %668 = vmatmul.f32.gmra.mxu0 %v629
    %v669 = vpop.f32.mrf.mxu0
    %v670 = vadd.f32 0.0, %v669
    %671 = vmatmul.f32.gmra.mxu0 %v632
    %v672 = vpop.f32.mrf.mxu0
    %v673 = vadd.f32 0.0, %v672
    %674 = vdwg.mxu0
    %v676 = vsel %vm172, %v594, 0
    %v679 = vsel %vm172, %v595, 0
    %v682 = vsel %vm172, %v596, 0
    %v685 = vsel %vm172, %v597, 0
    %v688 = vsel %vm172, %v598, 0
    %v691 = vsel %vm172, %v599, 0
    %v694 = vsel %vm172, %v600, 0
    %v697 = vsel %vm172, %v601, 0
    %699 = vmatpush.msra.mxu0 0.0
    %700 = vmatpush.msra.mxu0 0.0
    %701 = vmatpush.msra.mxu0 0.0
    %702 = vmatpush.msra.mxu0 0.0
    %703 = vmatpush.msra.mxu0 0.0
    %704 = vmatpush.msra.mxu0 0.0
    %705 = vmatpush.msra.mxu0 0.0
    %706 = vmatpush.msra.mxu0 0.0
    %707 = vmatpush.msra.mxu0 0.0
    %708 = vmatpush.msra.mxu0 0.0
    %709 = vmatpush.msra.mxu0 0.0
    %710 = vmatpush.msra.mxu0 0.0
    %711 = vmatpush.msra.mxu0 %v605
    %712 = vmatpush.msra.mxu0 %v604
    %713 = vmatpush.msra.mxu0 %v603
    %714 = vmatpush.msra.mxu0 %v602
    %715 = vmatmul.f32.gmra.mxu0 %v676
    %v716 = vpop.f32.mrf.mxu0
    %v717 = vadd.f32 %v652, %v716
    %718 = vmatmul.f32.gmra.mxu0 %v679
    %v719 = vpop.f32.mrf.mxu0
    %v720 = vadd.f32 %v655, %v719
    %721 = vmatmul.f32.gmra.mxu0 %v682
    %v722 = vpop.f32.mrf.mxu0
    %v723 = vadd.f32 %v658, %v722
    %724 = vmatmul.f32.gmra.mxu0 %v685
    %v725 = vpop.f32.mrf.mxu0
    %v726 = vadd.f32 %v661, %v725
    %727 = vmatmul.f32.gmra.mxu0 %v688
    %v728 = vpop.f32.mrf.mxu0
    %v729 = vadd.f32 %v664, %v728
    %730 = vmatmul.f32.gmra.mxu0 %v691
    %v731 = vpop.f32.mrf.mxu0
    %v732 = vadd.f32 %v667, %v731
    %733 = vmatmul.f32.gmra.mxu0 %v694
    %v734 = vpop.f32.mrf.mxu0
    %v735 = vadd.f32 %v670, %v734
    %736 = vmatmul.f32.gmra.mxu0 %v697
    %v737 = vpop.f32.mrf.mxu0
    %v738 = vadd.f32 %v673, %v737
    %739 = vdwg.mxu0
    %v740 = vld [vmem:[%s14] sm:$0x1]
    %v742 = vperm.slane %v740, 0
    %v744 = vadd.f32 %v717, %v742
    %v745 = vadd.f32 %v720, %v742
    %v746 = vadd.f32 %v723, %v742
    %v747 = vadd.f32 %v726, %v742
    %v748 = vadd.f32 %v729, %v742
    %v749 = vadd.f32 %v732, %v742
    %v750 = vadd.f32 %v735, %v742
    %v751 = vadd.f32 %v738, %v742
    %v752 = vmax.f32 %v744, 0.0
    %v753 = vmax.f32 %v745, 0.0
    %v754 = vmax.f32 %v746, 0.0
    %v755 = vmax.f32 %v747, 0.0
    %v756 = vmax.f32 %v748, 0.0
    %v757 = vmax.f32 %v749, 0.0
    %v758 = vmax.f32 %v750, 0.0
    %v759 = vmax.f32 %v751, 0.0
    %v760 = vld [vmem:[%s4] sm:$0xff]
    %v761 = vld [vmem:[%s4 + $0x8] sm:$0xff]
    %v762 = vld [vmem:[%s4 + $0x10] sm:$0xff]
    %v763 = vld [vmem:[%s4 + $0x18] sm:$0xff]
    %v764 = vld [vmem:[%s4 + $0x20] sm:$0xff]
    %v765 = vld [vmem:[%s4 + $0x28] sm:$0xff]
    %v766 = vld [vmem:[%s4 + $0x30] sm:$0xff]
    %v767 = vld [vmem:[%s4 + $0x38] sm:$0xff]
    %v768 = vld [vmem:[%s15] sm:$0xff]
    %v769 = vld [vmem:[%s15 + $0x8] sm:$0xff]
    %v770 = vld [vmem:[%s15 + $0x10] sm:$0xff]
    %v771 = vld [vmem:[%s15 + $0x18] sm:$0xff]
    %v772 = vld [vmem:[%s15 + $0x20] sm:$0xff]
    %v773 = vld [vmem:[%s15 + $0x28] sm:$0xff]
    %v774 = vld [vmem:[%s15 + $0x30] sm:$0xff]
    %v775 = vld [vmem:[%s15 + $0x38] sm:$0xff]
    %v776 = vld [vmem:[%s16] sm:$0x1]
    %v778 = vperm.slane %v776, 0
    %v781 = vsel %vm90, %v752, 0
    %v784 = vsel %vm90, %v753, 0
    %v787 = vsel %vm90, %v754, 0
    %v790 = vsel %vm90, %v755, 0
    %v793 = vsel %vm90, %v756, 0
    %v796 = vsel %vm90, %v757, 0
    %v799 = vsel %vm90, %v758, 0
    %v802 = vsel %vm90, %v759, 0
    %804 = vmatpush.msra.mxu0 0.0
    %805 = vmatpush.msra.mxu0 0.0
    %806 = vmatpush.msra.mxu0 0.0
    %807 = vmatpush.msra.mxu0 0.0
    %808 = vmatpush.msra.mxu0 0.0
    %809 = vmatpush.msra.mxu0 0.0
    %810 = vmatpush.msra.mxu0 0.0
    %811 = vmatpush.msra.mxu0 0.0
    %812 = vmatpush.msra.mxu0 %v775
    %813 = vmatpush.msra.mxu0 %v774
    %814 = vmatpush.msra.mxu0 %v773
    %815 = vmatpush.msra.mxu0 %v772
    %816 = vmatpush.msra.mxu0 %v771
    %817 = vmatpush.msra.mxu0 %v770
    %818 = vmatpush.msra.mxu0 %v769
    %819 = vmatpush.msra.mxu0 %v768
    %820 = vmatmul.f32.gmra.mxu0 %v781
    %v821 = vpop.f32.mrf.mxu0
    %v822 = vadd.f32 %v778, %v821
    %823 = vmatmul.f32.gmra.mxu0 %v784
    %v824 = vpop.f32.mrf.mxu0
    %v825 = vadd.f32 %v778, %v824
    %826 = vmatmul.f32.gmra.mxu0 %v787
    %v827 = vpop.f32.mrf.mxu0
    %v828 = vadd.f32 %v778, %v827
    %829 = vmatmul.f32.gmra.mxu0 %v790
    %v830 = vpop.f32.mrf.mxu0
    %v831 = vadd.f32 %v778, %v830
    %832 = vmatmul.f32.gmra.mxu0 %v793
    %v833 = vpop.f32.mrf.mxu0
    %v834 = vadd.f32 %v778, %v833
    %835 = vmatmul.f32.gmra.mxu0 %v796
    %v836 = vpop.f32.mrf.mxu0
    %v837 = vadd.f32 %v778, %v836
    %838 = vmatmul.f32.gmra.mxu0 %v799
    %v839 = vpop.f32.mrf.mxu0
    %v840 = vadd.f32 %v778, %v839
    %841 = vmatmul.f32.gmra.mxu0 %v802
    %v842 = vpop.f32.mrf.mxu0
    %v843 = vadd.f32 %v778, %v842
    %844 = vdwg.mxu0
    %846 = vset.pattern.permute.xlu0 0
    %847 = vperm.xlu0 %846, %v760
    %v848 = vpop.permute.xlu0 %847
    %851 = vset.pattern.permute.xlu0 0
    %852 = vperm.xlu0 %851, %v761
    %v853 = vpop.permute.xlu0 %852
    %856 = vset.pattern.permute.xlu0 0
    %857 = vperm.xlu0 %856, %v762
    %v858 = vpop.permute.xlu0 %857
    %861 = vset.pattern.permute.xlu0 0
    %862 = vperm.xlu0 %861, %v763
    %v863 = vpop.permute.xlu0 %862
    %866 = vset.pattern.permute.xlu0 0
    %867 = vperm.xlu0 %866, %v764
    %v868 = vpop.permute.xlu0 %867
    %871 = vset.pattern.permute.xlu0 0
    %872 = vperm.xlu0 %871, %v765
    %v873 = vpop.permute.xlu0 %872
    %876 = vset.pattern.permute.xlu0 0
    %877 = vperm.xlu0 %876, %v766
    %v878 = vpop.permute.xlu0 %877
    %881 = vset.pattern.permute.xlu0 0
    %882 = vperm.xlu0 %881, %v767
    %v883 = vpop.permute.xlu0 %882
    %v885 = vmul.f32 %v848, %v822
    %v886 = vmul.f32 %v853, %v825
    %v887 = vmul.f32 %v858, %v828
    %v888 = vmul.f32 %v863, %v831
    %v889 = vmul.f32 %v868, %v834
    %v890 = vmul.f32 %v873, %v837
    %v891 = vmul.f32 %v878, %v840
    %v892 = vmul.f32 %v883, %v843
    %v893 = vsel %vm90, %v885, 0.0
    %v894 = vrot.slane %v893, 4
    %v895 = vadd.f32 %v893, %v894
    %v896 = vrot.slane %v895, 2
    %v897 = vadd.f32 %v895, %v896
    %v898 = vrot.slane %v897, 1
    %v899 = vadd.f32 %v897, %v898
    %v900 = vsel %vm90, %v886, 0.0
    %v901 = vrot.slane %v900, 4
    %v902 = vadd.f32 %v900, %v901
    %v903 = vrot.slane %v902, 2
    %v904 = vadd.f32 %v902, %v903
    %v905 = vrot.slane %v904, 1
    %v906 = vadd.f32 %v904, %v905
    %v907 = vsel %vm90, %v887, 0.0
    %v908 = vrot.slane %v907, 4
    %v909 = vadd.f32 %v907, %v908
    %v910 = vrot.slane %v909, 2
    %v911 = vadd.f32 %v909, %v910
    %v912 = vrot.slane %v911, 1
    %v913 = vadd.f32 %v911, %v912
    %v914 = vsel %vm90, %v888, 0.0
    %v915 = vrot.slane %v914, 4
    %v916 = vadd.f32 %v914, %v915
    %v917 = vrot.slane %v916, 2
    %v918 = vadd.f32 %v916, %v917
    %v919 = vrot.slane %v918, 1
    %v920 = vadd.f32 %v918, %v919
    %v921 = vsel %vm90, %v889, 0.0
    %v922 = vrot.slane %v921, 4
    %v923 = vadd.f32 %v921, %v922
    %v924 = vrot.slane %v923, 2
    %v925 = vadd.f32 %v923, %v924
    %v926 = vrot.slane %v925, 1
    %v927 = vadd.f32 %v925, %v926
    %v928 = vsel %vm90, %v890, 0.0
    %v929 = vrot.slane %v928, 4
    %v930 = vadd.f32 %v928, %v929
    %v931 = vrot.slane %v930, 2
    %v932 = vadd.f32 %v930, %v931
    %v933 = vrot.slane %v932, 1
    %v934 = vadd.f32 %v932, %v933
    %v935 = vsel %vm90, %v891, 0.0
    %v936 = vrot.slane %v935, 4
    %v937 = vadd.f32 %v935, %v936
    %v938 = vrot.slane %v937, 2
    %v939 = vadd.f32 %v937, %v938
    %v940 = vrot.slane %v939, 1
    %v941 = vadd.f32 %v939, %v940
    %v942 = vsel %vm90, %v892, 0.0
    %v943 = vrot.slane %v942, 4
    %v944 = vadd.f32 %v942, %v943
    %v945 = vrot.slane %v944, 2
    %v946 = vadd.f32 %v944, %v945
    %v947 = vrot.slane %v946, 1
    %v948 = vadd.f32 %v946, %v947
    %v949 = vadd.f32 %v893, %v900
    %v950 = vadd.f32 %v949, %v907
    %v951 = vadd.f32 %v950, %v914
    %v952 = vadd.f32 %v951, %v921
    %v953 = vadd.f32 %v952, %v928
    %v954 = vadd.f32 %v953, %v935
    %v955 = vadd.f32 %v954, %v942
    %v957 = vrot.slane %v955, 1
    %v958 = vrot.slane %v955, 2
    %v959 = vrot.slane %v955, 3
    %v960 = vrot.slane %v955, 4
    %v961 = vrot.slane %v955, 5
    %v962 = vrot.slane %v955, 6
    %v963 = vrot.slane %v955, 7
    %964 = vrot.lane.b32.xlu0 %v955, 96
    %v965 = vpop.permute.xlu0 %964
    %966 = vrot.lane.b32.xlu0 %v957, 96
    %v967 = vpop.permute.xlu0 %966
    %968 = vrot.lane.b32.xlu0 %v958, 96
    %v969 = vpop.permute.xlu0 %968
    %970 = vrot.lane.b32.xlu0 %v959, 96
    %v971 = vpop.permute.xlu0 %970
    %972 = vrot.lane.b32.xlu0 %v960, 96
    %v973 = vpop.permute.xlu0 %972
    %974 = vrot.lane.b32.xlu0 %v961, 96
    %v975 = vpop.permute.xlu0 %974
    %976 = vrot.lane.b32.xlu0 %v962, 96
    %v977 = vpop.permute.xlu0 %976
    %978 = vrot.lane.b32.xlu0 %v963, 96
    %v979 = vpop.permute.xlu0 %978
    %v988 = vadd.f32 %v899, %v965
    %v989 = vadd.f32 %v906, %v967
    %v990 = vadd.f32 %v913, %v969
    %v991 = vadd.f32 %v920, %v971
    %v992 = vadd.f32 %v927, %v973
    %v993 = vadd.f32 %v934, %v975
    %v994 = vadd.f32 %v941, %v977
    %v995 = vadd.f32 %v948, %v979
    %v996 = vld [vmem:[%s17] sm:$0xff]
    %v997 = vld [vmem:[%s17 + $0x8] sm:$0xff]
    %v998 = vld [vmem:[%s17 + $0x10] sm:$0xff]
    %v999 = vld [vmem:[%s17 + $0x18] sm:$0xff]
    %v1000 = vld [vmem:[%s19] sm:$0x1]
    %v1002 = vperm.slane %v1000, 0
    %v1005 = vsel %vm172, %v69, 0
    %1007 = vmatpush.msra.mxu0 0.0
    %1008 = vmatpush.msra.mxu0 0.0
    %1009 = vmatpush.msra.mxu0 0.0
    %1010 = vmatpush.msra.mxu0 0.0
    %1011 = vmatpush.msra.mxu0 0.0
    %1012 = vmatpush.msra.mxu0 0.0
    %1013 = vmatpush.msra.mxu0 0.0
    %1014 = vmatpush.msra.mxu0 0.0
    %1015 = vmatpush.msra.mxu0 0.0
    %1016 = vmatpush.msra.mxu0 0.0
    %1017 = vmatpush.msra.mxu0 0.0
    %1018 = vmatpush.msra.mxu0 0.0
    %1019 = vmatpush.msra.mxu0 %v999
    %1020 = vmatpush.msra.mxu0 %v998
    %1021 = vmatpush.msra.mxu0 %v997
    %1022 = vmatpush.msra.mxu0 %v996
    %1023 = vmatmul.f32.gmra.mxu0 %v1005
    %v1024 = vpop.f32.mrf.mxu0
    %v1025 = vadd.f32 %v1002, %v1024
    %1026 = vdwg.mxu0
    %v1027 = vld [vmem:[%s18] sm:$0xff]
    %v1028 = vld [vmem:[%s18 + $0x8] sm:$0xff]
    %v1029 = vld [vmem:[%s18 + $0x10] sm:$0xff]
    %v1030 = vld [vmem:[%s18 + $0x18] sm:$0xff]
    %v1031 = vld [vmem:[%s20] sm:$0x1]
    %v1033 = vperm.slane %v1031, 0
    %v1043 = vrot.slane %v989, 7
    %vm1044 = vcmask 1041409
    %v1045 = vsel %vm1044, %v1043, %v988
    %v1046 = vrot.slane %v990, 6
    %vm1047 = vcmask 1042434
    %v1048 = vsel %vm1047, %v1046, %v1045
    %v1049 = vrot.slane %v991, 5
    %vm1050 = vcmask 1043459
    %v1051 = vsel %vm1050, %v1049, %v1048
    %v1052 = vrot.slane %v992, 4
    %vm1053 = vcmask 1044484
    %v1054 = vsel %vm1053, %v1052, %v1051
    %v1055 = vrot.slane %v993, 3
    %vm1056 = vcmask 1045509
    %v1057 = vsel %vm1056, %v1055, %v1054
    %v1058 = vrot.slane %v994, 2
    %vm1059 = vcmask 1046534
    %v1060 = vsel %vm1059, %v1058, %v1057
    %v1061 = vrot.slane %v995, 1
    %vm1062 = vcmask 1047559
    %v1063 = vsel %vm1062, %v1061, %v1060
    %v1064 = vsel %vm172, %v1063, 0
    %1066 = vmatpush.msra.mxu0 0.0
    %1067 = vmatpush.msra.mxu0 0.0
    %1068 = vmatpush.msra.mxu0 0.0
    %1069 = vmatpush.msra.mxu0 0.0
    %1070 = vmatpush.msra.mxu0 0.0
    %1071 = vmatpush.msra.mxu0 0.0
    %1072 = vmatpush.msra.mxu0 0.0
    %1073 = vmatpush.msra.mxu0 0.0
    %1074 = vmatpush.msra.mxu0 0.0
    %1075 = vmatpush.msra.mxu0 0.0
    %1076 = vmatpush.msra.mxu0 0.0
    %1077 = vmatpush.msra.mxu0 0.0
    %1078 = vmatpush.msra.mxu0 %v1030
    %1079 = vmatpush.msra.mxu0 %v1029
    %1080 = vmatpush.msra.mxu0 %v1028
    %1081 = vmatpush.msra.mxu0 %v1027
    %1082 = vmatmul.f32.gmra.mxu0 %v1064
    %v1083 = vpop.f32.mrf.mxu0
    %v1084 = vadd.f32 %v1033, %v1083
    %1085 = vdwg.mxu0
    %v1086 = vadd.f32 %v1025, %v1084
    %v1087 = vxor.u32 %v1086, 2147483648
    %v1088 = vmul.f32 %v1087, 1.442695
    %v1089 = vpow.pop %v1088
    %v1090 = vadd.f32 %v1089, 1.0
    %v1091 = vrcp.pop %v1090
    %v1092 = vmul.f32 %v1090, %v1091
    %v1093 = vsub.f32 1.0, %v1092
    %v1094 = vmul.f32 %v1091, %v1093
    %v1095 = vadd.f32 %v1091, %v1094
    %vm1096 = vweird.f32 %v1090
    %vm1097 = vweird.f32 %v1091
    %vm1098 = vmor %vm1096, %vm1097
    %v1099 = vsel %vm1098, %v1091, %v1095
    %v1100 = vand.u32 2147483647, %v1090
    %vm1101 = vcmp.eq.f32.partialorder %v1100, 8.507059e+37
    %v1102 = vand.u32 %v1090, 2147483648
    %v1103 = vor.u32 1.1754944e-38, %v1102
    %v1104 = vsel %vm1101, %v1103, %v1099
    %v1105 = vmul.f32 1.0, %v1104
    %1107 = vrot.lane.b32.xlu0 %v1084, 64
    %v1108 = vpop.permute.xlu0 %1107
    %v1110 = vmul.f32 %v1105, %v1108
    %1112 = vrot.lane.b32.xlu0 %v1110, 64
    %v1113 = vpop.permute.xlu0 %1112
    %v1115 = vadd.f32 %v1025, %v1113
    %v1116 = vtanh.pop %v1115
    %v1117 = vsub.f32 1.0, %v1105
    %1119 = vrot.lane.b32.xlu0 %v1116, 96
    %v1120 = vpop.permute.xlu0 %1119
    %v1122 = vmul.f32 %v1117, %v1120
    %1123 = vrot.lane.b32.xlu0 %v1063, 32
    %v1124 = vpop.permute.xlu0 %1123
    %v1126 = vmul.f32 %v1105, %v1124
    %v1127 = vadd.f32 %v1122, %v1126
    %1129 = vrot.lane.b32.xlu0 %v1127, 96
    %v1130 = vpop.permute.xlu0 %1129
    %1132 = vst.msk [vmem:[#allocation2] sm:$0xff] %vm172, %v1130
    // Predicated region
    $region86: #{raim_pallas.1} parent=1 // pred_check
      _
    $region87: #{raim_pallas.1} parent=1 // pred_check_branch
      %1134 = sbr.rel (0) target = $region89
    $region88: #{raim_pallas.1} parent=1 // pred_region
      %1136 = vsyncadd [#allocation3], 0
      %s1138 = sshll.u32 [#allocation2], 4
      %s1139 = int_to_ptr.vmem [resolvable:$true] %s1138
      %s1140 = sshll.u32 %s21, 4
      %s1141 = int_to_ptr.hbm [resolvable:$true] %s1140
      %1143 = dma.vmem_to_hbm [thread:$0]  %s1139, 128, %s1141, [#allocation3]
    $region89: #{raim_pallas.1} parent=1 // pred_fallthru
      _
    // Predicated region
    $region90: #{raim_pallas.1} parent=1 // pred_check
      _
    $region91: #{raim_pallas.1} parent=1 // pred_check_branch
      %1145 = sbr.rel (0) target = $region93
    $region92: #{raim_pallas.1} parent=1 // pred_region
      %1147 = dma.done [#allocation3], 128
    $region93: #{raim_pallas.1} parent=1 // pred_fallthru
      _
    %1148 = vsyncpa [#allocation3], 1

</llo_original>
